<compile_context>
chip_gen: v7x
topology: tpu7x:2x2x1
jax: 0.10.0
libtpu: 0.0.40
codegen_flags: <defaults>
</compile_context>

<pallas_src>
import functools

import jax
import jax.numpy as jnp
from jax.experimental import pallas as pl
from jax.experimental.pallas import tpu as pltpu

LANES = 128
SUBLANES = 8
TARGET_BLOCK_BYTES = 2 * 1024 * 1024  # ~2 MiB per input per grid step


def _round_up(a, b):
    return ((a + b - 1) // b) * b


def _loss_kernel(x_ref, t_ref, o_ref, *, tiles_per_split, tile_rows,
                 full_rows, rem_lanes, need_mask):
    """Accumulates sum of -x*t + max(x,0) + log(1+exp(-|x|)) over this core's
    slice of tiles into a resident (8,128) f32 output accumulator."""
    c = pl.program_id(0)
    i = pl.program_id(1)

    @pl.when(i == 0)
    def _():
        o_ref[...] = jnp.zeros_like(o_ref)

    x = x_ref[...].astype(jnp.float32)
    t = t_ref[...].astype(jnp.float32)

    # Exact module semantics: tmp = 1 + exp(-|x|); val = -x*t + clamp(x,0) + log(tmp)
    val = -x * t + jnp.maximum(x, 0.0) + jnp.log(1.0 + jnp.exp(-jnp.abs(x)))

    if need_mask:
        # Mask rows/lanes past the valid data.  The input index_map clamps the
        # block index, so grid steps past the last data block re-read valid
        # rows, but the mask below is computed from the *unclamped* position
        # and zeroes their contribution -> nothing is double counted, no OOB
        # DMAs, and padded/garbage elements never reach the sum.
        row_start = (c * tiles_per_split + i) * tile_rows
        grow = jax.lax.broadcasted_iota(jnp.int32, (tile_rows, LANES), 0) + row_start
        lane = jax.lax.broadcasted_iota(jnp.int32, (tile_rows, LANES), 1)
        valid = (grow < full_rows) | ((grow == full_rows) & (lane < rem_lanes))
        val = jnp.where(valid, val, 0.0)

    # Fold (tile_rows,128) -> (tile_rows/8, 8, 128) and add vreg-by-vreg into
    # the output accumulator: pure VPU, no cross-lane work in the kernel.
    o_ref[0] += val.reshape(-1, SUBLANES, LANES).sum(axis=0)


def sigmoid_cross_entropy_loss(x, target):
    assert x.shape == target.shape
    n = x.size

    xf = jnp.ravel(x)
    tf = jnp.ravel(target)

    full_rows, rem_lanes = divmod(n, LANES)
    rows_data = full_rows + (1 if rem_lanes else 0)
    if rem_lanes:
        # Only non-128-aligned sizes pay this single extra pass; aligned sizes
        # (the common case) feed the kernel through a zero-copy reshape.
        pad = rows_data * LANES - n
        xf = jnp.pad(xf, (0, pad))
        tf = jnp.pad(tf, (0, pad))
    x2 = xf.reshape(rows_data, LANES)
    t2 = tf.reshape(rows_data, LANES)

    # Tile sizing: ~2 MiB per input per step; row alignment follows dtype
    # packing (8 rows f32, 16 bf16, 32 int8-class).
    itemsizes = [jnp.dtype(x.dtype).itemsize, jnp.dtype(target.dtype).itemsize]
    align = SUBLANES * max(1, 4 // min(itemsizes))
    cap = max(align, (TARGET_BLOCK_BYTES // (LANES * max(itemsizes))) // align * align)
    tile_rows = min(cap, _round_up(rows_data, align))

    total_blocks = pl.cdiv(rows_data, tile_rows)
    # 2-way split of the tile loop so both v7x TensorCores work; odd block
    # counts are handled by index clamping + masking (never fall back to 1).
    num_splits = 2 if total_blocks >= 2 else 1
    tiles_per_split = pl.cdiv(total_blocks, num_splits)
    last_block = total_blocks - 1
    covered_rows = num_splits * tiles_per_split * tile_rows
    need_mask = covered_rows * LANES != n

    kernel = functools.partial(
        _loss_kernel,
        tiles_per_split=tiles_per_split,
        tile_rows=tile_rows,
        full_rows=full_rows,
        rem_lanes=rem_lanes,
        need_mask=need_mask,
    )

    def in_map(c, i):
        # Clamp so the overhang steps of the 2-way split never DMA out of
        # bounds; their contribution is masked to zero inside the kernel.
        return (jnp.minimum(c * tiles_per_split + i, last_block), 0)

    partials = pl.pallas_call(
        kernel,
        out_shape=jax.ShapeDtypeStruct((num_splits, SUBLANES, LANES), jnp.float32),
        grid_spec=pltpu.PrefetchScalarGridSpec(
            num_scalar_prefetch=0,
            grid=(num_splits, tiles_per_split),
            in_specs=[
                pl.BlockSpec((tile_rows, LANES), in_map),
                pl.BlockSpec((tile_rows, LANES), in_map),
            ],
            out_specs=pl.BlockSpec((1, SUBLANES, LANES), lambda c, i: (c, 0, 0)),
        ),
        compiler_params=pltpu.CompilerParams(
            dimension_semantics=("parallel", "arbitrary"),
        ),
    )(x2, t2)

    total = jnp.sum(partials)
    return jnp.abs(total / jnp.float32(n))


def _reference(x, target):
    x = x.astype(jnp.float32)
    target = target.astype(jnp.float32)
    tmp = 1.0 + jnp.exp(-jnp.abs(x))
    return jnp.abs(jnp.mean(-x * target + jnp.maximum(x, 0.0) + jnp.log(tmp)))


if __name__ == "__main__":
    key = jax.random.PRNGKey(0)
    kx, kt, kx2, kt2 = jax.random.split(key, 4)

    # NCHW-shaped logits and {0,1} targets (module is shape-agnostic).
    x = jax.random.normal(kx, (2, 4, 16, 16), dtype=jnp.float32)
    target = (jax.random.uniform(kt, (2, 4, 16, 16)) > 0.5).astype(jnp.float32)
    loss = sigmoid_cross_entropy_loss(x, target)
    jax.block_until_ready(loss)
    ref = _reference(x, target)
    assert jnp.allclose(loss, ref, rtol=1e-5, atol=1e-6), (loss, ref)

    # Non-128-aligned size to exercise the pad + in-kernel masking path.
    x_odd = jax.random.normal(kx2, (3, 5, 7), dtype=jnp.float32)
    t_odd = (jax.random.uniform(kt2, (3, 5, 7)) > 0.5).astype(jnp.float32)
    loss_odd = sigmoid_cross_entropy_loss(x_odd, t_odd)
    jax.block_until_ready(loss_odd)
    ref_odd = _reference(x_odd, t_odd)
    assert jnp.allclose(loss_odd, ref_odd, rtol=1e-5, atol=1e-6), (loss_odd, ref_odd)

    print("KERNEL_OK")
</pallas_src>

<mosaic_0001>
module attributes {stable_mosaic.version = 11 : i64} {
  func.func @_loss_kernel(%arg0: i32, %arg1: i32, %arg2: memref<16x128xf32, #tpu.memory_space<vmem>>, %arg3: memref<16x128xf32, #tpu.memory_space<vmem>>, %arg4: memref<1x8x128xf32, #tpu.memory_space<vmem>>) attributes {dimension_semantics = [#tpu.dimension_semantics<parallel>, #tpu.dimension_semantics<arbitrary>], iteration_bounds = array<i64: 1, 1>, scalar_prefetch = 0 : i64, scratch_operands = 0 : i64, tpu.core_type = #tpu.core_type<tc>, window_params = [{transform_indices = @transform_0, window_bounds = array<i64: 16, 128>}, {transform_indices = @transform_1, window_bounds = array<i64: 16, 128>}, {transform_indices = @transform_2, window_bounds = array<i64: 1, 8, 128>}]} {
    %c0_i32 = arith.constant 0 : i32
    %0 = arith.cmpi eq, %arg1, %c0_i32 : i32
    %1 = arith.extui %0 : i1 to i32
    %c0_i32_0 = arith.constant 0 : i32
    %2 = arith.cmpi ne, %1, %c0_i32_0 : i32
    scf.if %2 {
      %cst_14 = arith.constant 0.000000e+00 : f32
      %27 = vector.broadcast %cst_14 : f32 to vector<1x8x128xf32>
      %c0_15 = arith.constant 0 : index
      %c0_16 = arith.constant 0 : index
      %c0_17 = arith.constant 0 : index
      %28 = vector.load %arg4[%c0_15, %c0_16, %c0_17] : memref<1x8x128xf32, #tpu.memory_space<vmem>>, vector<1x8x128xf32>
      tpu.vector_store %arg4[%c0_15, %c0_16, %c0_17], %27 {strides = array<i32>} : memref<1x8x128xf32, #tpu.memory_space<vmem>>, vector<1x8x128xf32>,
    } else {
    }
    %c0 = arith.constant 0 : index
    %c0_1 = arith.constant 0 : index
    %3 = vector.load %arg2[%c0, %c0_1] : memref<16x128xf32, #tpu.memory_space<vmem>>, vector<16x128xf32>
    %c0_2 = arith.constant 0 : index
    %c0_3 = arith.constant 0 : index
    %4 = vector.load %arg3[%c0_2, %c0_3] : memref<16x128xf32, #tpu.memory_space<vmem>>, vector<16x128xf32>
    %cst = arith.constant 0.000000e+00 : f32
    %5 = vector.broadcast %cst : f32 to vector<16x128xf32>
    %6 = arith.subf %5, %3 : vector<16x128xf32>
    %7 = arith.mulf %6, %4 : vector<16x128xf32>
    %cst_4 = arith.constant 0.000000e+00 : f32
    %8 = vector.broadcast %cst_4 : f32 to vector<16x128xf32>
    %9 = arith.maximumf %3, %8 : vector<16x128xf32>
    %10 = arith.addf %7, %9 : vector<16x128xf32>
    %11 = math.absf %3 : vector<16x128xf32>
    %cst_5 = arith.constant 0.000000e+00 : f32
    %12 = vector.broadcast %cst_5 : f32 to vector<16x128xf32>
    %13 = arith.subf %12, %11 : vector<16x128xf32>
    %14 = math.exp %13 : vector<16x128xf32>
    %cst_6 = arith.constant 1.000000e+00 : f32
    %15 = vector.broadcast %cst_6 : f32 to vector<16x128xf32>
    %16 = arith.addf %15, %14 : vector<16x128xf32>
    %17 = math.log %16 : vector<16x128xf32>
    %18 = arith.addf %10, %17 : vector<16x128xf32>
    %c0_7 = arith.constant 0 : index
    %c0_8 = arith.constant 0 : index
    %c0_9 = arith.constant 0 : index
    %19 = vector.load %arg4[%c0_7, %c0_8, %c0_9] : memref<1x8x128xf32, #tpu.memory_space<vmem>>, vector<1x8x128xf32>
    %20 = vector.shape_cast %19 : vector<1x8x128xf32> to vector<8x128xf32>
    %21 = vector.shape_cast %18 : vector<16x128xf32> to vector<2x8x128xf32>
    %cst_10 = arith.constant dense<0.000000e+00> : vector<8x128xf32>
    %22 = vector.multi_reduction <add>, %21, %cst_10 [0] : vector<2x8x128xf32> to vector<8x128xf32>
    %23 = arith.addf %20, %22 : vector<8x128xf32>
    %c0_11 = arith.constant 0 : index
    %c0_12 = arith.constant 0 : index
    %c0_13 = arith.constant 0 : index
    %24 = vector.load %arg4[%c0_11, %c0_12, %c0_13] : memref<1x8x128xf32, #tpu.memory_space<vmem>>, vector<1x8x128xf32>
    %25 = vector.shape_cast %24 : vector<1x8x128xf32> to vector<8x128xf32>
    %26 = vector.shape_cast %23 : vector<8x128xf32> to vector<1x8x128xf32>
    tpu.vector_store %arg4[%c0_11, %c0_12, %c0_13], %26 {strides = array<i32>} : memref<1x8x128xf32, #tpu.memory_space<vmem>>, vector<1x8x128xf32>,
    return
  }
  func.func @transform_0(%arg0: i32, %arg1: i32) -> (i32, i32) {
    %c1_i32 = arith.constant 1 : i32
    %0 = arith.muli %arg0, %c1_i32 : i32
    %1 = arith.addi %0, %arg1 : i32
    %c0_i32 = arith.constant 0 : i32
    %2 = arith.minsi %1, %c0_i32 : i32
    %c0_i32_0 = arith.constant 0 : i32
    %c0_i32_1 = arith.constant 0 : i32
    return %2, %c0_i32_0 : i32, i32
  }
  func.func @transform_1(%arg0: i32, %arg1: i32) -> (i32, i32) {
    %c1_i32 = arith.constant 1 : i32
    %0 = arith.muli %arg0, %c1_i32 : i32
    %1 = arith.addi %0, %arg1 : i32
    %c0_i32 = arith.constant 0 : i32
    %2 = arith.minsi %1, %c0_i32 : i32
    %c0_i32_0 = arith.constant 0 : i32
    %c0_i32_1 = arith.constant 0 : i32
    return %2, %c0_i32_0 : i32, i32
  }
  func.func @transform_2(%arg0: i32, %arg1: i32) -> (i32, i32, i32) {
    %c0_i32 = arith.constant 0 : i32
    %c0_i32_0 = arith.constant 0 : i32
    %c0_i32_1 = arith.constant 0 : i32
    return %arg0, %c0_i32, %c0_i32_0 : i32, i32, i32
  }
}

</mosaic_0001>

<llo_original>
// kernel: tpu_custom_call.1
$region0: #{tpu_custom_call.1}
  #allocation0 [shape = 'u32[]', space=smem, size = 0x4, offset = 0x4, fixed_abs, tag = 'smem constant byte address 0x4 - core index']
  #allocation1 [shape = 'u32[144,128]{1,0:T(1,128)}', space=vmem, size = 0x12000, scoped, tag = 'internal scratch']
  %s0 = inlined_call_operand.hbm [shape: f32[16,128], index: 0, kind: input, shape index: {}]
  %s1 = inlined_call_operand.hbm [shape: f32[16,128], index: 1, kind: input, shape index: {}]
  %s2 = inlined_call_operand.hbm [shape: f32[1,8,128], index: 2, kind: output, shape index: {}]
  %s3 = sld [smem:[#allocation0]]
  $region30: #{tpu_custom_call.1} parent=0
    _
  %s5 = ssub.s32 1, %s3
  %s6 = scalar_select 0, %s5, %s3
  $region1: #{tpu_custom_call.1} parent=0
    #allocation2 [shape = 'u8[8192]{0}', space=vmem, size = 0x2000, scoped, tag = 'input window, operand 0, single buffered']
    #allocation3 [shape = 's32[1]{0}', space=sflag, size = 0x4, scoped, tag = 'scoped memory for tpu_custom_call.1']
    #allocation4 [shape = 's32[1]{0}', space=sflag, size = 0x4, scoped, tag = 'scoped memory for tpu_custom_call.1']
    #allocation5 [shape = 'u8[8192]{0}', space=vmem, size = 0x2000, scoped, tag = 'input window, operand 1, single buffered']
    #allocation6 [shape = 's32[1]{0}', space=sflag, size = 0x4, scoped, tag = 'scoped memory for tpu_custom_call.1']
    #allocation7 [shape = 'u8[4096]{0}', space=vmem, size = 0x1000, scoped, tag = 'output window, operand 0, single buffered']
    %7 = vsyncpa [#allocation3], 0
    %8 = vsyncpa [#allocation6], 0
    %9 = vsyncpa [#allocation4], 0
    // Predicated region
    $region2: #{tpu_custom_call.1} parent=1 // pred_check
      _
    $region3: #{tpu_custom_call.1} parent=1 // pred_check_branch
      %11 = sbr.rel (0) target = $region5
    $region4: #{tpu_custom_call.1} parent=1 // pred_region
      %s12 = sadd.s32 0, 0
      %p13 = scmp.lt.s32.totalorder %s12, 0
      %s14 = scalar_select %p13, %s12, 0
      %s15 = smul.u32 2, %s14
      %s17 = ssub.s32 256, 256
      %18 = vsyncadd [#allocation3], %s17
      %s19 = smul.addr %s15, 128
      %s20 = scalar_lea.hbm %s0, %s19
      %s21 = sshll.u32 [#allocation2], 4
      %s22 = int_to_ptr.vmem [resolvable:$true] %s21
      %27 = dma.hbm_to_vmem [thread:$0]  %s20, 256, %s22, [#allocation3], 128, 128, 8
    $region5: #{tpu_custom_call.1} parent=1 // pred_fallthru
      _
    // Predicated region
    $region6: #{tpu_custom_call.1} parent=1 // pred_check
      _
    $region7: #{tpu_custom_call.1} parent=1 // pred_check_branch
      %29 = sbr.rel (0) target = $region9
    $region8: #{tpu_custom_call.1} parent=1 // pred_region
      %s30 = sadd.s32 0, 0
      %p31 = scmp.lt.s32.totalorder %s30, 0
      %s32 = scalar_select %p31, %s30, 0
      %s33 = smul.u32 2, %s32
      %s35 = ssub.s32 256, 256
      %36 = vsyncadd [#allocation6], %s35
      %s37 = smul.addr %s33, 128
      %s38 = scalar_lea.hbm %s1, %s37
      %s39 = sshll.u32 [#allocation5], 4
      %s40 = int_to_ptr.vmem [resolvable:$true] %s39
      %45 = dma.hbm_to_vmem [thread:$0]  %s38, 256, %s40, [#allocation6], 128, 128, 8
    $region9: #{tpu_custom_call.1} parent=1 // pred_fallthru
      _
    // Predicated region
    $region10: #{tpu_custom_call.1} parent=1 // pred_check
      _
    $region11: #{tpu_custom_call.1} parent=1 // pred_check_branch
      %47 = sbr.rel (0) target = $region13
    $region12: #{tpu_custom_call.1} parent=1 // pred_region
      %48 = dma.done [#allocation3], 256
    $region13: #{tpu_custom_call.1} parent=1 // pred_fallthru
      _
    // Predicated region
    $region14: #{tpu_custom_call.1} parent=1 // pred_check
      _
    $region15: #{tpu_custom_call.1} parent=1 // pred_check_branch
      %50 = sbr.rel (0) target = $region17
    $region16: #{tpu_custom_call.1} parent=1 // pred_region
      %51 = dma.done [#allocation6], 256
    $region17: #{tpu_custom_call.1} parent=1 // pred_fallthru
      _
    %s52 = sadd.s32 0, 0
    %p53 = scmp.lt.s32.totalorder %s52, 0
    %s54 = scalar_select %p53, %s52, 0
    %s55 = smul.u32 2, %s54
    %s56 = sadd.s32 0, 0
    %p57 = scmp.lt.s32.totalorder %s56, 0
    %s58 = scalar_select %p57, %s56, 0
    %s59 = smul.u32 2, %s58
    %p60 = scmp.eq.s32.totalorder 0, 0
    // Predicated region
    $region18: #{tpu_custom_call.1} parent=1 // pred_check
      %p61 = pneg %p60
    $region19: #{tpu_custom_call.1} parent=1 // pred_check_branch
      %63 = sbr.rel (%p61) target = $region21
    $region20: #{tpu_custom_call.1} parent=1 // pred_region
      %64 = vst [vmem:[#allocation7] sm:$0xff] 0.0
    $region21: #{tpu_custom_call.1} parent=1 // pred_fallthru
      _
    %v65 = vld [vmem:[#allocation2] sm:$0xff]
    %v66 = vld [vmem:[#allocation2 + $0x8] sm:$0xff]
    %v67 = vld [vmem:[#allocation5] sm:$0xff]
    %v68 = vld [vmem:[#allocation5 + $0x8] sm:$0xff]
    %v69 = vsub.f32 0.0, %v65
    %v70 = vsub.f32 0.0, %v66
    %v71 = vmul.f32 %v69, %v67
    %v72 = vmul.f32 %v70, %v68
    %v73 = vmax.f32 %v65, 0.0
    %v74 = vmax.f32 %v66, 0.0
    %v75 = vadd.f32 %v71, %v73
    %v76 = vadd.f32 %v72, %v74
    %v77 = vand.u32 2147483647, %v65
    %v78 = vand.u32 2147483647, %v66
    %v79 = vsub.f32 0.0, %v77
    %v80 = vsub.f32 0.0, %v78
    %v81 = vmul.f32 %v79, 1.442695
    %v82 = vpow.pop %v81
    %v83 = vmul.f32 %v80, 1.442695
    %v84 = vpow.pop %v83
    %v85 = vadd.f32 %v82, 1.0
    %v86 = vadd.f32 %v84, 1.0
    %v87 = vlog2.pop %v85
    %v88 = vmul.f32 %v87, 0.6931472
    %v89 = vlog2.pop %v86
    %v90 = vmul.f32 %v89, 0.6931472
    %v91 = vadd.f32 %v75, %v88
    %v92 = vadd.f32 %v76, %v90
    %v93 = vld [vmem:[#allocation7] sm:$0xff]
    %v94 = vadd.f32 %v91, %v92
    %v95 = vadd.f32 %v93, %v94
    %96 = vst [vmem:[#allocation7] sm:$0xff] %v95
    // Predicated region
    $region22: #{tpu_custom_call.1} parent=1 // pred_check
      _
    $region23: #{tpu_custom_call.1} parent=1 // pred_check_branch
      %98 = sbr.rel (0) target = $region25
    $region24: #{tpu_custom_call.1} parent=1 // pred_region
      %s100 = ssub.s32 128, 128
      %101 = vsyncadd [#allocation4], %s100
      %s103 = sshll.u32 [#allocation7], 4
      %s104 = int_to_ptr.vmem [resolvable:$true] %s103
      %106 = dma.vmem_to_hbm [thread:$0]  %s104, 128, %s2, [#allocation4]
    $region25: #{tpu_custom_call.1} parent=1 // pred_fallthru
      _
    // Predicated region
    $region26: #{tpu_custom_call.1} parent=1 // pred_check
      _
    $region27: #{tpu_custom_call.1} parent=1 // pred_check_branch
      %108 = sbr.rel (0) target = $region29
    $region28: #{tpu_custom_call.1} parent=1 // pred_region
      %109 = dma.done [#allocation4], 128
    $region29: #{tpu_custom_call.1} parent=1 // pred_fallthru
      _
    %110 = vsyncpa [#allocation3], 1
    %111 = vsyncpa [#allocation6], 1
    %112 = vsyncpa [#allocation4], 1

</llo_original>
